<compile_context>
chip_gen: v5e
topology: v5e:2x2
jax: 0.10.0
libtpu: 0.0.40
codegen_flags: <defaults>
</compile_context>

<pallas_src>
import jax
import jax.numpy as jnp
from jax.experimental import pallas as pl
from jax.experimental.pallas import tpu as pltpu

_GATHER_CHUNK = 2048  # HW elements per one-hot matmul step (~1 MiB onehot transient)


def _norm_reg_l1_kernel(feat_ref,    # VMEM (Bb, C, HW)  feature slab (input dtype)
                        target_ref,  # VMEM (Bb, C, N)
                        mask_ref,    # VMEM (Bb, 1, N)
                        ind_ref,     # VMEM (Bb, 1, N) int32
                        lsum_ref):   # VMEM (Bb, 1, 1) f32  per-batch |diff| sums
    Bb, C, HW = feat_ref.shape
    N = ind_ref.shape[-1]

    # Static chunking of the HW axis (whole axis if small, else an even divisor).
    chunk = HW
    if HW > _GATHER_CHUNK:
        for cand in (_GATHER_CHUNK, 1024, 512, 256, 128):
            if HW % cand == 0:
                chunk = cand
                break

    for b in range(Bb):                       # static unroll over blocked batches
        idx = ind_ref[b]                      # (1, N) int32

        # In-VMEM gather: one-hot matmul, chunked along HW.
        acc = jnp.zeros((C, N), jnp.float32)
        for start in range(0, HW, chunk):     # static unroll over HW chunks
            size = min(chunk, HW - start)
            fb = feat_ref[b, :, pl.ds(start, size)].astype(jnp.float32)  # (C, size)
            pos = jax.lax.broadcasted_iota(jnp.int32, (size, N), 0) + start
            onehot = (pos == idx).astype(jnp.float32)                    # (size, N)
            acc = acc + jnp.dot(fb, onehot, preferred_element_type=jnp.float32)

        # Normalized L1 in lane-dense (C, N) layout; f32 casts happen here.
        tgt = target_ref[b].astype(jnp.float32)        # (C, N)
        m = mask_ref[b].astype(jnp.float32)            # (1, N), broadcasts over C
        pred = acc * pl.reciprocal(tgt + 0.0001, approx=True)
        diff = jnp.abs(pred * m - m)                   # target -> ones: |pred*m - m|
        lsum_ref[b] = jnp.sum(diff, keepdims=True)     # (1, 1) per-batch partial


def norm_reg_l1_loss(output, target, mask, ind, *, batch_block=1):
    """output: (B,C,H,W) NCHW; target: (B,N,C); mask: (B,N); ind: (B,N) int."""
    B, C, H, W = output.shape
    HW = H * W
    N = ind.shape[1]

    if B % batch_block != 0:
        batch_block = 1
    bs = batch_block

    feat = output.reshape(B, C, HW)                 # layout-preserving, free
    target_t = jnp.transpose(target, (0, 2, 1))     # (B, C, N) -- tiny tensor
    mask_r = mask.reshape(B, 1, N)
    if mask_r.dtype == jnp.bool_:
        mask_r = mask_r.astype(jnp.float32)
    ind_r = ind.astype(jnp.int32).reshape(B, 1, N)

    grid_spec = pltpu.PrefetchScalarGridSpec(
        num_scalar_prefetch=0,
        grid=(B // bs,),
        in_specs=[
            pl.BlockSpec((bs, C, HW), lambda i: (i, 0, 0)),   # feature slab
            pl.BlockSpec((bs, C, N), lambda i: (i, 0, 0)),    # target (C,N)
            pl.BlockSpec((bs, 1, N), lambda i: (i, 0, 0)),    # mask (1,N)
            pl.BlockSpec((bs, 1, N), lambda i: (i, 0, 0)),    # ind  (1,N)
        ],
        out_specs=pl.BlockSpec((bs, 1, 1), lambda i: (i, 0, 0)),
    )

    lsum = pl.pallas_call(
        _norm_reg_l1_kernel,
        out_shape=jax.ShapeDtypeStruct((B, 1, 1), jnp.float32),
        grid_spec=grid_spec,
        compiler_params=pltpu.CompilerParams(
            dimension_semantics=("parallel",)),     # batches are independent
    )(feat, target_t, mask_r, ind_r)

    # Expanded-mask sum has no gather dependence: sum(mask) * C in the wrapper.
    msum = jnp.sum(mask.astype(jnp.float32)) * float(C)
    return jnp.sum(lsum) / (msum + 0.0001)


def _reference_loss(output, target, mask, ind):
    """Pure-JAX reference mirroring the PyTorch module exactly."""
    B, C, H, W = output.shape
    feat = jnp.transpose(output, (0, 2, 3, 1)).reshape(B, H * W, C)
    pred = jnp.take_along_axis(feat, ind[:, :, None].astype(jnp.int32), axis=1)
    m = jnp.broadcast_to(mask[:, :, None].astype(jnp.float32), pred.shape)
    pred = pred / (target + 0.0001)
    loss = jnp.sum(jnp.abs(pred * m - m))
    return loss / (jnp.sum(m) + 0.0001)


if __name__ == "__main__":
    B, C, H, W, N = 2, 4, 16, 16, 8
    key = jax.random.PRNGKey(0)
    k1, k2, k3, k4 = jax.random.split(key, 4)

    output = jax.random.normal(k1, (B, C, H, W), dtype=jnp.float32)
    target = jax.random.normal(k2, (B, N, C), dtype=jnp.float32)
    mask = (jax.random.uniform(k3, (B, N)) > 0.3).astype(jnp.float32)
    ind = jax.random.randint(k4, (B, N), 0, H * W, dtype=jnp.int32)

    ref = _reference_loss(output, target, mask, ind)

    # One batch per grid step (keeps >=2 parallel steps for v7x's 2 TCs).
    loss1 = jax.block_until_ready(norm_reg_l1_loss(output, target, mask, ind))
    # Blocked batches per grid step (amortizes per-step overhead on v5e/v6e).
    loss2 = jax.block_until_ready(
        norm_reg_l1_loss(output, target, mask, ind, batch_block=2))

    # Slightly looser rtol than the exact-divide version because of
    # pl.reciprocal(approx=True); well within the review's stated tolerance.
    assert jnp.allclose(loss1, ref, rtol=2e-3, atol=1e-3), (loss1, ref)
    assert jnp.allclose(loss2, ref, rtol=2e-3, atol=1e-3), (loss2, ref)

    print("KERNEL_OK")
</pallas_src>

<mosaic_0001>
module attributes {stable_mosaic.version = 11 : i64} {
  func.func @_norm_reg_l1_kernel(%arg0: i32, %arg1: memref<1x4x256xf32, #tpu.memory_space<vmem>>, %arg2: memref<1x4x8xf32, #tpu.memory_space<vmem>>, %arg3: memref<1x1x8xf32, #tpu.memory_space<vmem>>, %arg4: memref<1x1x8xi32, #tpu.memory_space<vmem>>, %arg5: memref<1x1x1xf32, #tpu.memory_space<vmem>>) attributes {dimension_semantics = [#tpu.dimension_semantics<parallel>], iteration_bounds = array<i64: 2>, scalar_prefetch = 0 : i64, scratch_operands = 0 : i64, tpu.core_type = #tpu.core_type<tc>, window_params = [{transform_indices = @transform_0, window_bounds = array<i64: 1, 4, 256>}, {transform_indices = @transform_1, window_bounds = array<i64: 1, 4, 8>}, {transform_indices = @transform_2, window_bounds = array<i64: 1, 1, 8>}, {transform_indices = @transform_3, window_bounds = array<i64: 1, 1, 8>}, {transform_indices = @transform_4, window_bounds = array<i64: 1, 1, 1>}]} {
    %c0 = arith.constant 0 : index
    %c0_0 = arith.constant 0 : index
    %c0_1 = arith.constant 0 : index
    %0 = vector.load %arg4[%c0, %c0_0, %c0_1] : memref<1x1x8xi32, #tpu.memory_space<vmem>>, vector<1x1x8xi32>
    %1 = vector.shape_cast %0 : vector<1x1x8xi32> to vector<1x8xi32>
    %cst = arith.constant 0.000000e+00 : f32
    %2 = vector.broadcast %cst : f32 to vector<4x8xf32>
    %c0_2 = arith.constant 0 : index
    %c0_3 = arith.constant 0 : index
    %c0_4 = arith.constant 0 : index
    %3 = vector.load %arg1[%c0_2, %c0_3, %c0_4] : memref<1x4x256xf32, #tpu.memory_space<vmem>>, vector<1x4x256xf32>
    %4 = vector.shape_cast %3 : vector<1x4x256xf32> to vector<4x256xf32>
    %5 = tpu.iota {dimensions = array<i32: 0>} : vector<256x8xi32>
    %c0_i32 = arith.constant 0 : i32
    %6 = vector.broadcast %c0_i32 : i32 to vector<256x8xi32>
    %7 = arith.addi %5, %6 : vector<256x8xi32>
    %8 = vector.broadcast %1 : vector<1x8xi32> to vector<256x8xi32>
    %9 = arith.cmpi eq, %7, %8 : vector<256x8xi32>
    %10 = arith.extui %9 : vector<256x8xi1> to vector<256x8xi32>
    %11 = arith.sitofp %10 : vector<256x8xi32> to vector<256x8xf32>
    %cst_5 = arith.constant dense<0.000000e+00> : vector<4x8xf32>
    %12 = tpu.matmul %4, %11, %cst_5 {dimension_numbers = #tpu.dot_dimension_numbers<[1], [0], [0], [1], [0, 0, 1, 1], [], []>} : vector<4x256xf32>, vector<256x8xf32>, vector<4x8xf32> -> vector<4x8xf32>
    %13 = arith.addf %2, %12 : vector<4x8xf32>
    %c0_6 = arith.constant 0 : index
    %c0_7 = arith.constant 0 : index
    %c0_8 = arith.constant 0 : index
    %14 = vector.load %arg2[%c0_6, %c0_7, %c0_8] : memref<1x4x8xf32, #tpu.memory_space<vmem>>, vector<1x4x8xf32>
    %15 = vector.shape_cast %14 : vector<1x4x8xf32> to vector<4x8xf32>
    %c0_9 = arith.constant 0 : index
    %c0_10 = arith.constant 0 : index
    %c0_11 = arith.constant 0 : index
    %16 = vector.load %arg3[%c0_9, %c0_10, %c0_11] : memref<1x1x8xf32, #tpu.memory_space<vmem>>, vector<1x1x8xf32>
    %17 = vector.shape_cast %16 : vector<1x1x8xf32> to vector<1x8xf32>
    %cst_12 = arith.constant 9.99999974E-5 : f32
    %18 = vector.broadcast %cst_12 : f32 to vector<4x8xf32>
    %19 = arith.addf %15, %18 : vector<4x8xf32>
    %20 = tpu.reciprocal %19 {approx = true} : vector<4x8xf32> -> vector<4x8xf32>
    %21 = arith.mulf %13, %20 : vector<4x8xf32>
    %22 = vector.broadcast %17 : vector<1x8xf32> to vector<4x8xf32>
    %23 = arith.mulf %21, %22 : vector<4x8xf32>
    %24 = vector.broadcast %17 : vector<1x8xf32> to vector<4x8xf32>
    %25 = arith.subf %23, %24 : vector<4x8xf32>
    %26 = math.absf %25 : vector<4x8xf32>
    %27 = vector.shape_cast %26 : vector<4x8xf32> to vector<1x4x8xf32>
    %cst_13 = arith.constant dense<0.000000e+00> : vector<1xf32>
    %28 = vector.multi_reduction <add>, %27, %cst_13 [1, 2] : vector<1x4x8xf32> to vector<1xf32>
    %29 = vector.shape_cast %28 : vector<1xf32> to vector<1x1x1xf32>
    %30 = vector.extract %29[0, 0, 0] : f32 from vector<1x1x1xf32>
    %31 = vector.broadcast %30 : f32 to vector<1x1xf32>
    %c0_14 = arith.constant 0 : index
    %c0_15 = arith.constant 0 : index
    %c0_16 = arith.constant 0 : index
    %32 = vector.load %arg5[%c0_14, %c0_15, %c0_16] : memref<1x1x1xf32, #tpu.memory_space<vmem>>, vector<1x1x1xf32>
    %33 = vector.shape_cast %32 : vector<1x1x1xf32> to vector<1x1xf32>
    %34 = vector.shape_cast %31 : vector<1x1xf32> to vector<1x1x1xf32>
    tpu.vector_store %arg5[%c0_14, %c0_15, %c0_16], %34 {strides = array<i32>} : memref<1x1x1xf32, #tpu.memory_space<vmem>>, vector<1x1x1xf32>,
    return
  }
  func.func @transform_0(%arg0: i32) -> (i32, i32, i32) {
    %c0_i32 = arith.constant 0 : i32
    %c0_i32_0 = arith.constant 0 : i32
    %c0_i32_1 = arith.constant 0 : i32
    return %arg0, %c0_i32, %c0_i32_0 : i32, i32, i32
  }
  func.func @transform_1(%arg0: i32) -> (i32, i32, i32) {
    %c0_i32 = arith.constant 0 : i32
    %c0_i32_0 = arith.constant 0 : i32
    %c0_i32_1 = arith.constant 0 : i32
    return %arg0, %c0_i32, %c0_i32_0 : i32, i32, i32
  }
  func.func @transform_2(%arg0: i32) -> (i32, i32, i32) {
    %c0_i32 = arith.constant 0 : i32
    %c0_i32_0 = arith.constant 0 : i32
    %c0_i32_1 = arith.constant 0 : i32
    return %arg0, %c0_i32, %c0_i32_0 : i32, i32, i32
  }
  func.func @transform_3(%arg0: i32) -> (i32, i32, i32) {
    %c0_i32 = arith.constant 0 : i32
    %c0_i32_0 = arith.constant 0 : i32
    %c0_i32_1 = arith.constant 0 : i32
    return %arg0, %c0_i32, %c0_i32_0 : i32, i32, i32
  }
  func.func @transform_4(%arg0: i32) -> (i32, i32, i32) {
    %c0_i32 = arith.constant 0 : i32
    %c0_i32_0 = arith.constant 0 : i32
    %c0_i32_1 = arith.constant 0 : i32
    return %arg0, %c0_i32, %c0_i32_0 : i32, i32, i32
  }
}

</mosaic_0001>

<llo_original>
// kernel: tpu_custom_call.1
$region0: #{tpu_custom_call.1}
  #allocation0 [shape = 'u32[]', space=smem, size = 0x4, offset = 0x4, fixed_abs, tag = 'smem constant byte address 0x4 - core index']
  #allocation1 [shape = 'u32[72,128]{1,0:T(1,128)}', space=vmem, size = 0x9000, scoped, tag = 'internal scratch']
  %s0 = inlined_call_operand.hbm [shape: f32[2,4,256], index: 0, kind: input, shape index: {}]
  %s1 = inlined_call_operand.hbm [shape: f32[2,4,8], index: 1, kind: input, shape index: {}]
  %s2 = inlined_call_operand.hbm [shape: f32[2,1,8], index: 2, kind: input, shape index: {}]
  %s3 = inlined_call_operand.vmem [shape: s32[2,1,8], index: 3, kind: input, shape index: {}]
  %s4 = inlined_call_operand.vmem [shape: f32[2,1,1], index: 4, kind: output, shape index: {}]
  %s5 = sld [smem:[#allocation0]]
  $region61: #{tpu_custom_call.1} parent=0
    _
  %s7 = ssub.s32 1, %s5
  %s8 = scalar_select 0, %s7, %s5
  $region1: #{tpu_custom_call.1} parent=0
    #allocation2 [shape = 'u8[8192]{0}', space=vmem, size = 0x2000, scoped, tag = 'input window, operand 0']
    #allocation3 [shape = 's32[2]{0}', space=sflag, size = 0x8, scoped, tag = 'scoped memory for tpu_custom_call.1']
    #allocation4 [shape = 'u8[4096]{0}', space=vmem, size = 0x1000, scoped, tag = 'input window, operand 1']
    #allocation5 [shape = 's32[2]{0}', space=sflag, size = 0x8, scoped, tag = 'scoped memory for tpu_custom_call.1']
    #allocation6 [shape = 'u8[1024]{0}', space=vmem, size = 0x400, scoped, tag = 'input window, operand 2']
    %9 = vsyncpa [#allocation3], 0
    %s10 = scalar_lea.sflag [#allocation3], 1
    %11 = vsyncpa %s10, 0
    %12 = vsyncpa [#allocation5], 0
    %s13 = scalar_lea.sflag [#allocation5], 1
    %14 = vsyncpa %s13, 0
    loop: start=0, step=1, limit=4
    $region2: #{tpu_custom_call.1} parent=1 // loop_pre_header
      _
    $region3: #{tpu_custom_call.1} parent=1 // loop_header
      %s16 = sphi 0, %s20
      %p17 = scmp.ge.s32.totalorder %s16, 4
      %s26 = sphi 0, %s28
      %s29 = sphi 0, %s26
      %s30 = sphi 0, %s29
      %s46 = sphi 0, %s30
      %s52 = sphi 0, %s54
      %s55 = sphi 0, %s52
      %s56 = sphi 0, %s55
      %s72 = sphi 0, %s56
      %s78 = sphi 0, %s80
      %s81 = sphi 0, %s78
      %s82 = sphi 0, %s81
      %s98 = sphi 0, %s82
      %s104 = sphi 0, %s106
      %s107 = sphi 0, %s104
      %s108 = sphi 0, %s107
      %s124 = sphi 0, %s108
      %s130 = sphi 0, %s132
      %s133 = sphi 0, %s130
      %s134 = sphi 0, %s133
      %s150 = sphi 0, %s134
    $region4: #{tpu_custom_call.1} parent=1 // loop_header_branch
      %19 = sbr.rel (%p17) target = $region8
    $region5: #{tpu_custom_call.1} parent=1 // loop_body
      %s21 = ssub.s32 %s16, 1
      %s22 = ssub.s32 %s16, 2
      %s23 = sadd.s32 %s16, 1
      %s24 = ssub.s32 %s16, %s23
      %p25 = scmp.eq.s32.totalorder %s24, 0
      %s27 = sadd.s32 %s26, 1
      %s28 = scalar_select %p25, %s26, %s27
      %p31 = pneg %p25
      %p32 = scmp.eq.s32.totalorder %s16, 1
      %p33 = por %p31, %p32
      %p34 = scmp.ne.s32.totalorder %s26, %s29
      %p35 = scmp.eq.s32.totalorder %s16, 0
      %p36 = por %p34, %p35
      %p37 = scmp.ne.s32.totalorder %s26, %s29
      %p38 = scmp.eq.s32.totalorder %s21, 1
      %p39 = por %p37, %p38
      %p40 = scmp.ne.s32.totalorder %s29, %s30
      %p41 = scmp.eq.s32.totalorder %s21, 0
      %p42 = por %p40, %p41
      %p43 = scmp.ne.s32.totalorder %s29, %s30
      %p44 = scmp.eq.s32.totalorder %s22, 1
      %p45 = por %p43, %p44
      %p47 = scmp.ne.s32.totalorder %s30, %s46
      %p48 = scmp.eq.s32.totalorder %s22, 0
      %p49 = por %p47, %p48
      %s50 = ssub.s32 %s16, %s23
      %p51 = scmp.eq.s32.totalorder %s50, 0
      %s53 = sadd.s32 %s52, 1
      %s54 = scalar_select %p51, %s52, %s53
      %p57 = pneg %p51
      %p58 = scmp.eq.s32.totalorder %s16, 1
      %p59 = por %p57, %p58
      %p60 = scmp.ne.s32.totalorder %s52, %s55
      %p61 = scmp.eq.s32.totalorder %s16, 0
      %p62 = por %p60, %p61
      %p63 = scmp.ne.s32.totalorder %s52, %s55
      %p64 = scmp.eq.s32.totalorder %s21, 1
      %p65 = por %p63, %p64
      %p66 = scmp.ne.s32.totalorder %s55, %s56
      %p67 = scmp.eq.s32.totalorder %s21, 0
      %p68 = por %p66, %p67
      %p69 = scmp.ne.s32.totalorder %s55, %s56
      %p70 = scmp.eq.s32.totalorder %s22, 1
      %p71 = por %p69, %p70
      %p73 = scmp.ne.s32.totalorder %s56, %s72
      %p74 = scmp.eq.s32.totalorder %s22, 0
      %p75 = por %p73, %p74
      %s76 = ssub.s32 %s16, %s23
      %p77 = scmp.eq.s32.totalorder %s76, 0
      %s79 = sadd.s32 %s78, 1
      %s80 = scalar_select %p77, %s78, %s79
      %p83 = pneg %p77
      %p84 = scmp.eq.s32.totalorder %s16, 1
      %p85 = por %p83, %p84
      %p86 = scmp.ne.s32.totalorder %s78, %s81
      %p87 = scmp.eq.s32.totalorder %s16, 0
      %p88 = por %p86, %p87
      %p89 = scmp.ne.s32.totalorder %s78, %s81
      %p90 = scmp.eq.s32.totalorder %s21, 1
      %p91 = por %p89, %p90
      %p92 = scmp.ne.s32.totalorder %s81, %s82
      %p93 = scmp.eq.s32.totalorder %s21, 0
      %p94 = por %p92, %p93
      %p95 = scmp.ne.s32.totalorder %s81, %s82
      %p96 = scmp.eq.s32.totalorder %s22, 1
      %p97 = por %p95, %p96
      %p99 = scmp.ne.s32.totalorder %s82, %s98
      %p100 = scmp.eq.s32.totalorder %s22, 0
      %p101 = por %p99, %p100
      %s102 = ssub.s32 %s16, %s23
      %p103 = scmp.eq.s32.totalorder %s102, 0
      %s105 = sadd.s32 %s104, 1
      %s106 = scalar_select %p103, %s104, %s105
      %p109 = pneg %p103
      %p110 = scmp.eq.s32.totalorder %s16, 1
      %p111 = por %p109, %p110
      %p112 = scmp.ne.s32.totalorder %s104, %s107
      %p113 = scmp.eq.s32.totalorder %s16, 0
      %p114 = por %p112, %p113
      %p115 = scmp.ne.s32.totalorder %s104, %s107
      %p116 = scmp.eq.s32.totalorder %s21, 1
      %p117 = por %p115, %p116
      %p118 = scmp.ne.s32.totalorder %s107, %s108
      %p119 = scmp.eq.s32.totalorder %s21, 0
      %p120 = por %p118, %p119
      %p121 = scmp.ne.s32.totalorder %s107, %s108
      %p122 = scmp.eq.s32.totalorder %s22, 1
      %p123 = por %p121, %p122
      %p125 = scmp.ne.s32.totalorder %s108, %s124
      %p126 = scmp.eq.s32.totalorder %s22, 0
      %p127 = por %p125, %p126
      %s128 = ssub.s32 %s16, %s23
      %p129 = scmp.eq.s32.totalorder %s128, 0
      %s131 = sadd.s32 %s130, 1
      %s132 = scalar_select %p129, %s130, %s131
      %p135 = pneg %p129
      %p136 = scmp.eq.s32.totalorder %s16, 1
      %p137 = por %p135, %p136
      %p138 = scmp.ne.s32.totalorder %s130, %s133
      %p139 = scmp.eq.s32.totalorder %s16, 0
      %p140 = por %p138, %p139
      %p141 = scmp.ne.s32.totalorder %s130, %s133
      %p142 = scmp.eq.s32.totalorder %s21, 1
      %p143 = por %p141, %p142
      %p144 = scmp.ne.s32.totalorder %s133, %s134
      %p145 = scmp.eq.s32.totalorder %s21, 0
      %p146 = por %p144, %p145
      %p147 = scmp.ne.s32.totalorder %s133, %s134
      %p148 = scmp.eq.s32.totalorder %s22, 1
      %p149 = por %p147, %p148
      %p151 = scmp.ne.s32.totalorder %s134, %s150
      %p152 = scmp.eq.s32.totalorder %s22, 0
      %p153 = por %p151, %p152
      %p154 = scmp.le.s32.totalorder 1, %s16
      %p155 = scmp.lt.s32.totalorder %s16, 3
      %p156 = pnand %p154, %p155
      %p157 = pneg %p156
      // Predicated region
      $region9: #{tpu_custom_call.1} parent=5 // pred_check
        _
      $region10: #{tpu_custom_call.1} parent=5 // pred_check_branch
        %159 = sbr.rel (%p156) target = $region12
      $region11: #{tpu_custom_call.1} parent=5 // pred_region
        %s160 = ssub.s32 %s16, 1
      $region12: #{tpu_custom_call.1} parent=5 // pred_fallthru
        _
      %p161 = scmp.lt.s32.totalorder %s16, 2
      // Predicated region
      $region13: #{tpu_custom_call.1} parent=5 // pred_check
        %p162 = pneg %p161
      $region14: #{tpu_custom_call.1} parent=5 // pred_check_branch
        %164 = sbr.rel (%p162) target = $region16
      $region15: #{tpu_custom_call.1} parent=5 // pred_region
        // Predicated region
        $region17: #{tpu_custom_call.1} parent=15 // pred_check
          %p165 = pneg %p36
        $region18: #{tpu_custom_call.1} parent=15 // pred_check_branch
          %167 = sbr.rel (%p165) target = $region20
        $region19: #{tpu_custom_call.1} parent=15 // pred_region
          %s168 = sand.u32 %s26, 1
          %s169 = scalar_lea.sflag [#allocation3], %s168
          %s170 = sand.u32 %s26, 1
          %s171 = smul.addr %s170, 8
          %s172 = scalar_lea.vmem [#allocation2], %s171
          %174 = vsyncadd %s169, 0
          %s175 = smul.addr %s16, 2
          %s176 = smul.addr %s175, 4
          %s177 = scalar_lea.hbm %s0, %s176
          %s179 = sshll.u32 %s177, 4
          %s180 = int_to_ptr.hbm [resolvable:$true] %s179
          %s181 = sshll.u32 %s172, 4
          %s182 = int_to_ptr.vmem [resolvable:$true] %s181
          %184 = dma.hbm_to_vmem [thread:$0]  %s180, 128, %s182, %s169
        $region20: #{tpu_custom_call.1} parent=15 // pred_fallthru
          _
        // Predicated region
        $region21: #{tpu_custom_call.1} parent=15 // pred_check
          %p185 = pneg %p62
        $region22: #{tpu_custom_call.1} parent=15 // pred_check_branch
          %187 = sbr.rel (%p185) target = $region24
        $region23: #{tpu_custom_call.1} parent=15 // pred_region
          %s188 = sand.u32 %s16, 1
          %s189 = scalar_lea.sflag [#allocation5], %s188
          %s190 = sand.u32 %s52, 1
          %s191 = smul.addr %s190, 4
          %s192 = scalar_lea.vmem [#allocation4], %s191
          %194 = vsyncadd %s189, 0
          %s195 = smul.addr %s16, 4
          %s196 = scalar_lea.hbm %s1, %s195
          %s198 = sshll.u32 %s196, 4
          %s199 = int_to_ptr.hbm [resolvable:$true] %s198
          %s200 = sshll.u32 %s192, 4
          %s201 = int_to_ptr.vmem [resolvable:$true] %s200
          %203 = dma.hbm_to_vmem [thread:$0]  %s199, 64, %s201, %s189
        $region24: #{tpu_custom_call.1} parent=15 // pred_fallthru
          _
        // Predicated region
        $region25: #{tpu_custom_call.1} parent=15 // pred_check
          %p204 = pneg %p88
        $region26: #{tpu_custom_call.1} parent=15 // pred_check_branch
          %206 = sbr.rel (%p204) target = $region28
        $region27: #{tpu_custom_call.1} parent=15 // pred_region
          %s207 = sand.u32 %s16, 1
          %s208 = scalar_lea.sflag [#allocation5], %s207
          %s209 = sand.u32 %s78, 1
          %s210 = scalar_lea.vmem [#allocation6], %s209
          %212 = vsyncadd %s208, 0
          %s213 = scalar_lea.hbm %s2, %s16
          %s215 = sshll.u32 %s213, 4
          %s216 = int_to_ptr.hbm [resolvable:$true] %s215
          %s217 = sshll.u32 %s210, 4
          %s218 = int_to_ptr.vmem [resolvable:$true] %s217
          %220 = dma.hbm_to_vmem [thread:$0]  %s216, 16, %s218, %s208
        $region28: #{tpu_custom_call.1} parent=15 // pred_fallthru
          _
        // Predicated region
        $region29: #{tpu_custom_call.1} parent=15 // pred_check
          %p221 = pneg %p114
        $region30: #{tpu_custom_call.1} parent=15 // pred_check_branch
          %223 = sbr.rel (%p221) target = $region32
        $region31: #{tpu_custom_call.1} parent=15 // pred_region
          %p224 = scmp.lt.s32.totalorder %s16, 1
          %s225 = scalar_select %p224, %s16, 1
          %s226 = scalar_lea.vmem %s3, %s225
        $region32: #{tpu_custom_call.1} parent=15 // pred_fallthru
          _
      $region16: #{tpu_custom_call.1} parent=5 // pred_fallthru
        _
      %p227 = scmp.le.s32.totalorder 1, %s16
      %p228 = scmp.lt.s32.totalorder %s16, 3
      %p229 = pnand %p227, %p228
      %p230 = pneg %p229
      // Predicated region
      $region33: #{tpu_custom_call.1} parent=5 // pred_check
        _
      $region34: #{tpu_custom_call.1} parent=5 // pred_check_branch
        %232 = sbr.rel (%p229) target = $region36
      $region35: #{tpu_custom_call.1} parent=5 // pred_region
        %s233 = ssub.s32 %s16, 1
        %s234 = sand.u32 %s29, 1
        %s235 = scalar_lea.sflag [#allocation3], %s234
        %s236 = sand.u32 %s29, 1
        %s237 = smul.addr %s236, 8
        %s238 = scalar_lea.vmem [#allocation2], %s237
        // Predicated region
        $region37: #{tpu_custom_call.1} parent=35 // pred_check
          %p239 = pneg %p42
        $region38: #{tpu_custom_call.1} parent=35 // pred_check_branch
          %241 = sbr.rel (%p239) target = $region40
        $region39: #{tpu_custom_call.1} parent=35 // pred_region
          %243 = dma.done %s235, 128
        $region40: #{tpu_custom_call.1} parent=35 // pred_fallthru
          _
        %s244 = sand.u32 %s21, 1
        %s245 = scalar_lea.sflag [#allocation5], %s244
        %s246 = sand.u32 %s55, 1
        %s247 = smul.addr %s246, 4
        %s248 = scalar_lea.vmem [#allocation4], %s247
        // Predicated region
        $region41: #{tpu_custom_call.1} parent=35 // pred_check
          %p249 = pneg %p68
        $region42: #{tpu_custom_call.1} parent=35 // pred_check_branch
          %251 = sbr.rel (%p249) target = $region44
        $region43: #{tpu_custom_call.1} parent=35 // pred_region
          %253 = dma.done %s245, 64
        $region44: #{tpu_custom_call.1} parent=35 // pred_fallthru
          _
        %s254 = sand.u32 %s21, 1
        %s255 = scalar_lea.sflag [#allocation5], %s254
        %s256 = sand.u32 %s81, 1
        %s257 = scalar_lea.vmem [#allocation6], %s256
        // Predicated region
        $region45: #{tpu_custom_call.1} parent=35 // pred_check
          %p258 = pneg %p94
        $region46: #{tpu_custom_call.1} parent=35 // pred_check_branch
          %260 = sbr.rel (%p258) target = $region48
        $region47: #{tpu_custom_call.1} parent=35 // pred_region
          %262 = dma.done %s255, 16
        $region48: #{tpu_custom_call.1} parent=35 // pred_fallthru
          _
        %s263 = sand.u32 %s29, 1
        %s264 = scalar_lea.sflag [#allocation3], %s263
        %s265 = sand.u32 %s29, 1
        %s266 = smul.addr %s265, 8
        %s267 = scalar_lea.vmem [#allocation2], %s266
        %p268 = pneg %p42
        %p269 = pneg %p39
        %s270 = sand.u32 %s21, 1
        %s271 = scalar_lea.sflag [#allocation5], %s270
        %s272 = sand.u32 %s55, 1
        %s273 = smul.addr %s272, 4
        %s274 = scalar_lea.vmem [#allocation4], %s273
        %p275 = pneg %p68
        %p276 = pneg %p65
        %s277 = sand.u32 %s21, 1
        %s278 = scalar_lea.sflag [#allocation5], %s277
        %s279 = sand.u32 %s81, 1
        %s280 = scalar_lea.vmem [#allocation6], %s279
        %p281 = pneg %p94
        %p282 = pneg %p91
        %p283 = scmp.lt.s32.totalorder %s21, 1
        %s284 = scalar_select %p283, %s21, 1
        %s285 = scalar_lea.vmem %s3, %s284
        %p286 = pneg %p120
        %p287 = pneg %p117
        %p288 = pneg %p146
        %p289 = pneg %p143
        %p290 = scmp.lt.s32.totalorder %s21, 1
        %s291 = scalar_select %p290, %s21, 1
        %s292 = scalar_lea.vmem %s4, %s291
        %p293 = scmp.lt.s32.totalorder %s21, 1
        %s294 = scalar_select %p293, %s21, 1
        %s295 = scalar_lea.vmem %s3, %s294
        %p296 = scmp.lt.s32.totalorder %s21, 1
        %s297 = scalar_select %p296, %s21, 1
        %s298 = scalar_lea.vmem %s4, %s297
        %v299 = vld [vmem:[%s295] sm:$0x1]
        %v300 = vld [vmem:[%s238] sm:$0xff]
        %v301 = vlaneseq
        %v302 = vshrl.u32 %v301, 7
        %v303 = vadd.s32 %v302, 8
        %v304 = vadd.s32 %v302, 16
        %v305 = vadd.s32 %v302, 24
        %v306 = vadd.s32 %v302, 32
        %v307 = vadd.s32 %v302, 40
        %v308 = vadd.s32 %v302, 48
        %v309 = vadd.s32 %v302, 56
        %v310 = vadd.s32 %v302, 64
        %v311 = vadd.s32 %v302, 72
        %v312 = vadd.s32 %v302, 80
        %v313 = vadd.s32 %v302, 88
        %v314 = vadd.s32 %v302, 96
        %v315 = vadd.s32 %v302, 104
        %v316 = vadd.s32 %v302, 112
        %v317 = vadd.s32 %v302, 120
        %v318 = vadd.s32 %v302, 128
        %v319 = vadd.s32 %v302, 136
        %v320 = vadd.s32 %v302, 144
        %v321 = vadd.s32 %v302, 152
        %v322 = vadd.s32 %v302, 160
        %v323 = vadd.s32 %v302, 168
        %v324 = vadd.s32 %v302, 176
        %v325 = vadd.s32 %v302, 184
        %v326 = vadd.s32 %v302, 192
        %v327 = vadd.s32 %v302, 200
        %v328 = vadd.s32 %v302, 208
        %v329 = vadd.s32 %v302, 216
        %v330 = vadd.s32 %v302, 224
        %v331 = vadd.s32 %v302, 232
        %v332 = vadd.s32 %v302, 240
        %v333 = vadd.s32 %v302, 248
        %v334 = vperm.slane %v299, 0
        %vm335 = vcmp.eq.s32.totalorder %v302, %v334
        %vm336 = vcmp.eq.s32.totalorder %v303, %v334
        %vm337 = vcmp.eq.s32.totalorder %v304, %v334
        %vm338 = vcmp.eq.s32.totalorder %v305, %v334
        %vm339 = vcmp.eq.s32.totalorder %v306, %v334
        %vm340 = vcmp.eq.s32.totalorder %v307, %v334
        %vm341 = vcmp.eq.s32.totalorder %v308, %v334
        %vm342 = vcmp.eq.s32.totalorder %v309, %v334
        %vm343 = vcmp.eq.s32.totalorder %v310, %v334
        %vm344 = vcmp.eq.s32.totalorder %v311, %v334
        %vm345 = vcmp.eq.s32.totalorder %v312, %v334
        %vm346 = vcmp.eq.s32.totalorder %v313, %v334
        %vm347 = vcmp.eq.s32.totalorder %v314, %v334
        %vm348 = vcmp.eq.s32.totalorder %v315, %v334
        %vm349 = vcmp.eq.s32.totalorder %v316, %v334
        %vm350 = vcmp.eq.s32.totalorder %v317, %v334
        %vm351 = vcmp.eq.s32.totalorder %v318, %v334
        %vm352 = vcmp.eq.s32.totalorder %v319, %v334
        %vm353 = vcmp.eq.s32.totalorder %v320, %v334
        %vm354 = vcmp.eq.s32.totalorder %v321, %v334
        %vm355 = vcmp.eq.s32.totalorder %v322, %v334
        %vm356 = vcmp.eq.s32.totalorder %v323, %v334
        %vm357 = vcmp.eq.s32.totalorder %v324, %v334
        %vm358 = vcmp.eq.s32.totalorder %v325, %v334
        %vm359 = vcmp.eq.s32.totalorder %v326, %v334
        %vm360 = vcmp.eq.s32.totalorder %v327, %v334
        %vm361 = vcmp.eq.s32.totalorder %v328, %v334
        %vm362 = vcmp.eq.s32.totalorder %v329, %v334
        %vm363 = vcmp.eq.s32.totalorder %v330, %v334
        %vm364 = vcmp.eq.s32.totalorder %v331, %v334
        %vm365 = vcmp.eq.s32.totalorder %v332, %v334
        %vm366 = vcmp.eq.s32.totalorder %v333, %v334
        %v367 = vsel %vm335, 1, 0
        %v368 = vsel %vm336, 1, 0
        %v369 = vsel %vm337, 1, 0
        %v370 = vsel %vm338, 1, 0
        %v371 = vsel %vm339, 1, 0
        %v372 = vsel %vm340, 1, 0
        %v373 = vsel %vm341, 1, 0
        %v374 = vsel %vm342, 1, 0
        %v375 = vsel %vm343, 1, 0
        %v376 = vsel %vm344, 1, 0
        %v377 = vsel %vm345, 1, 0
        %v378 = vsel %vm346, 1, 0
        %v379 = vsel %vm347, 1, 0
        %v380 = vsel %vm348, 1, 0
        %v381 = vsel %vm349, 1, 0
        %v382 = vsel %vm350, 1, 0
        %v383 = vsel %vm351, 1, 0
        %v384 = vsel %vm352, 1, 0
        %v385 = vsel %vm353, 1, 0
        %v386 = vsel %vm354, 1, 0
        %v387 = vsel %vm355, 1, 0
        %v388 = vsel %vm356, 1, 0
        %v389 = vsel %vm357, 1, 0
        %v390 = vsel %vm358, 1, 0
        %v391 = vsel %vm359, 1, 0
        %v392 = vsel %vm360, 1, 0
        %v393 = vsel %vm361, 1, 0
        %v394 = vsel %vm362, 1, 0
        %v395 = vsel %vm363, 1, 0
        %v396 = vsel %vm364, 1, 0
        %v397 = vsel %vm365, 1, 0
        %v398 = vsel %vm366, 1, 0
        %v399 = vcvt.s32.f32 %v367
        %v400 = vcvt.s32.f32 %v368
        %v401 = vcvt.s32.f32 %v369
        %v402 = vcvt.s32.f32 %v370
        %v403 = vcvt.s32.f32 %v371
        %v404 = vcvt.s32.f32 %v372
        %v405 = vcvt.s32.f32 %v373
        %v406 = vcvt.s32.f32 %v374
        %v407 = vcvt.s32.f32 %v375
        %v408 = vcvt.s32.f32 %v376
        %v409 = vcvt.s32.f32 %v377
        %v410 = vcvt.s32.f32 %v378
        %v411 = vcvt.s32.f32 %v379
        %v412 = vcvt.s32.f32 %v380
        %v413 = vcvt.s32.f32 %v381
        %v414 = vcvt.s32.f32 %v382
        %v415 = vcvt.s32.f32 %v383
        %v416 = vcvt.s32.f32 %v384
        %v417 = vcvt.s32.f32 %v385
        %v418 = vcvt.s32.f32 %v386
        %v419 = vcvt.s32.f32 %v387
        %v420 = vcvt.s32.f32 %v388
        %v421 = vcvt.s32.f32 %v389
        %v422 = vcvt.s32.f32 %v390
        %v423 = vcvt.s32.f32 %v391
        %v424 = vcvt.s32.f32 %v392
        %v425 = vcvt.s32.f32 %v393
        %v426 = vcvt.s32.f32 %v394
        %v427 = vcvt.s32.f32 %v395
        %v428 = vcvt.s32.f32 %v396
        %v429 = vcvt.s32.f32 %v397
        %v430 = vcvt.s32.f32 %v398
        %432 = vst [vmem:[#allocation1] ss:$2 sm:$0xff] %v300
        %v433 = vld.sshfl [vmem:[#allocation1] sm:$0xff pattern:$0x75316420]
        %v434 = vld.sshfl [vmem:[#allocation1 + $0x8] sm:$0xff pattern:$0x75316420]
        %437 = vmatpush.msra.mxu0 %v414
        %438 = vmatpush.msra.mxu0 %v413
        %439 = vmatpush.msra.mxu0 %v412
        %440 = vmatpush.msra.mxu0 %v411
        %441 = vmatpush.msra.mxu0 %v410
        %442 = vmatpush.msra.mxu0 %v409
        %443 = vmatpush.msra.mxu0 %v408
        %444 = vmatpush.msra.mxu0 %v407
        %445 = vmatpush.msra.mxu0 %v406
        %446 = vmatpush.msra.mxu0 %v405
        %447 = vmatpush.msra.mxu0 %v404
        %448 = vmatpush.msra.mxu0 %v403
        %449 = vmatpush.msra.mxu0 %v402
        %450 = vmatpush.msra.mxu0 %v401
        %451 = vmatpush.msra.mxu0 %v400
        %452 = vmatpush.msra.mxu0 %v399
        %453 = vmatmul.f32.gmra.mxu0 %v433
        %v454 = vpop.f32.mrf.mxu0
        %v455 = vadd.f32 0.0, %v454
        %456 = vdwg.mxu0
        %457 = vmatpush.msra.mxu0 %v430
        %458 = vmatpush.msra.mxu0 %v429
        %459 = vmatpush.msra.mxu0 %v428
        %460 = vmatpush.msra.mxu0 %v427
        %461 = vmatpush.msra.mxu0 %v426
        %462 = vmatpush.msra.mxu0 %v425
        %463 = vmatpush.msra.mxu0 %v424
        %464 = vmatpush.msra.mxu0 %v423
        %465 = vmatpush.msra.mxu0 %v422
        %466 = vmatpush.msra.mxu0 %v421
        %467 = vmatpush.msra.mxu0 %v420
        %468 = vmatpush.msra.mxu0 %v419
        %469 = vmatpush.msra.mxu0 %v418
        %470 = vmatpush.msra.mxu0 %v417
        %471 = vmatpush.msra.mxu0 %v416
        %472 = vmatpush.msra.mxu0 %v415
        %473 = vmatmul.f32.gmra.mxu0 %v434
        %v474 = vpop.f32.mrf.mxu0
        %v475 = vadd.f32 %v455, %v474
        %476 = vdwg.mxu0
        %v477 = vld [vmem:[%s248] sm:$0xf]
        %v478 = vld [vmem:[%s257] sm:$0x1]
        %v479 = vadd.f32 %v477, 0.0001
        %v480 = vrcp.pop %v479
        %v481 = vmul.f32 %v475, %v480
        %v483 = vperm.slane %v478, 0
        %v485 = vmul.f32 %v481, %v483
        %v486 = vsub.f32 %v485, %v483
        %v487 = vand.u32 2147483647, %v486
        %vm488 = vcmask 60416
        %v489 = vsel %vm488, %v487, 0.0
        %490 = vadd.xlane.f32.xlu0 %v489
        %v491 = vpop.xlane.xlu0 %490
        %v492 = vrot.slane %v491, 4
        %v493 = vadd.f32 %v491, %v492
        %v494 = vrot.slane %v493, 2
        %v495 = vadd.f32 %v493, %v494
        %v496 = vrot.slane %v495, 1
        %v497 = vadd.f32 %v495, %v496
        %s498 = vtos %v497
        %v499 = vstv %s498
        %vm500 = vcmask 0
        %501 = vst.msk [vmem:[%s298] sm:$0x1] %vm500, %v499
        %p502 = scmp.lt.s32.totalorder %s21, 1
        %s503 = scalar_select %p502, %s21, 1
        %s504 = scalar_lea.vmem %s4, %s503
        // Predicated region
        $region49: #{tpu_custom_call.1} parent=35 // pred_check
          %p505 = pneg %p143
        $region50: #{tpu_custom_call.1} parent=35 // pred_check_branch
          %507 = sbr.rel (%p505) target = $region52
        $region51: #{tpu_custom_call.1} parent=35 // pred_region
          _
        $region52: #{tpu_custom_call.1} parent=35 // pred_fallthru
          _
      $region36: #{tpu_custom_call.1} parent=5 // pred_fallthru
        _
      %p508 = scmp.le.s32.totalorder 2, %s16
      // Predicated region
      $region53: #{tpu_custom_call.1} parent=5 // pred_check
        %p509 = pneg %p508
      $region54: #{tpu_custom_call.1} parent=5 // pred_check_branch
        %511 = sbr.rel (%p509) target = $region56
      $region55: #{tpu_custom_call.1} parent=5 // pred_region
        %s512 = ssub.s32 %s16, 2
        // Predicated region
        $region57: #{tpu_custom_call.1} parent=55 // pred_check
          %p513 = pneg %p149
        $region58: #{tpu_custom_call.1} parent=55 // pred_check_branch
          %515 = sbr.rel (%p513) target = $region60
        $region59: #{tpu_custom_call.1} parent=55 // pred_region
          %p516 = scmp.lt.s32.totalorder %s22, 1
          %s517 = scalar_select %p516, %s22, 1
          %s518 = scalar_lea.vmem %s4, %s517
        $region60: #{tpu_custom_call.1} parent=55 // pred_fallthru
          _
      $region56: #{tpu_custom_call.1} parent=5 // pred_fallthru
        _
    $region6: #{tpu_custom_call.1} parent=1 // loop_footer
      %s20 = sadd.s32 1, %s16
    $region7: #{tpu_custom_call.1} parent=1 // loop_footer_branch
      %15 = sbr.rel target = $region3
    $region8: #{tpu_custom_call.1} parent=1 // loop_exit
      _
    %519 = vsyncpa [#allocation3], 1
    %s520 = scalar_lea.sflag [#allocation3], 1
    %521 = vsyncpa %s520, 1
    %522 = vsyncpa [#allocation5], 1
    %s523 = scalar_lea.sflag [#allocation5], 1
    %524 = vsyncpa %s523, 1

</llo_original>
